<compile_context>
chip_gen: v7x
topology: tpu7x:2x2x1
jax: 0.10.0
libtpu: 0.0.40
codegen_flags: <defaults>
</compile_context>

<pallas_src>
import functools
import math

import jax
import jax.numpy as jnp
from jax import lax
from jax.experimental import pallas as pl
from jax.experimental.pallas import tpu as pltpu


# Large finite negative used for masking (safe with online softmax: exp underflows to 0,
# and m_prev - m_new never overflows f32).
MASK_VALUE = -0.7 * float(jnp.finfo(jnp.float32).max)

_VMEM_LIMIT = 48 * 1024 * 1024  # explicit scoped-VMEM cap, leaves headroom on v7x (64 MiB)


def _choose_block(dim, desired):
    """Largest block <= desired that divides `dim` and keeps the sublane dim a
    multiple of 8; falls back to the full dim (always legal for a BlockSpec)."""
    b = min(desired, dim)
    if dim % b == 0 and (b % 8 == 0 or b == dim):
        return b
    b = (min(desired, dim) // 8) * 8
    while b >= 8:
        if dim % b == 0:
            return b
        b -= 8
    return dim


# ---------------------------------------------------------------------------
# Projection kernel: y = x @ W  (batch folded into M, weight resident in VMEM)
# ---------------------------------------------------------------------------
def _proj_kernel(x_ref, w_ref, o_ref):
    o_ref[...] = jnp.dot(
        x_ref[...], w_ref[...], preferred_element_type=jnp.float32
    ).astype(o_ref.dtype)


def _linear(x, w_t, *, block_m=256):
    """x: (B, S, E), w_t: (E, Eo) already transposed to [in, out]. Returns (B, S, Eo)."""
    B, S, E = x.shape
    Eo = w_t.shape[1]
    m = B * S
    bm = _choose_block(m, block_m)
    x2 = x.reshape(m, E)
    out = pl.pallas_call(
        _proj_kernel,
        out_shape=jax.ShapeDtypeStruct((m, Eo), x.dtype),
        grid_spec=pltpu.PrefetchScalarGridSpec(
            num_scalar_prefetch=0,
            grid=(m // bm,),
            in_specs=[
                pl.BlockSpec((bm, E), lambda i: (i, 0)),
                pl.BlockSpec((E, Eo), lambda i: (0, 0)),
            ],
            out_specs=pl.BlockSpec((bm, Eo), lambda i: (i, 0)),
        ),
        compiler_params=pltpu.CompilerParams(
            dimension_semantics=("parallel",),
            vmem_limit_bytes=_VMEM_LIMIT,
        ),
    )(x2, w_t)
    return out.reshape(B, S, Eo)


# ---------------------------------------------------------------------------
# Flash-style attention kernel over (B, q_blocks, kv_blocks)
# ---------------------------------------------------------------------------
def _flash_attn_kernel(q_ref, k_ref, v_ref, o_ref, m_ref, l_ref, acc_ref,
                       *, causal, block_q, block_kv):
    qi = pl.program_id(1)
    ki = pl.program_id(2)

    @pl.when(ki == 0)
    def _init():
        m_ref[...] = jnp.full(m_ref.shape, MASK_VALUE, m_ref.dtype)
        l_ref[...] = jnp.zeros(l_ref.shape, l_ref.dtype)
        acc_ref[...] = jnp.zeros(acc_ref.shape, acc_ref.dtype)

    def _compute():
        q = q_ref[...]   # (block_q, E), already scaled by 1/sqrt(E) (folded into Wq)
        k = k_ref[...]   # (block_kv, E)
        v = v_ref[...]   # (block_kv, E)

        # Scores: contract the last dim of both operands -> no K transpose / XLU work.
        s = lax.dot_general(
            q, k, (((1,), (1,)), ((), ())), preferred_element_type=jnp.float32
        )  # (block_q, block_kv), f32

        if causal:
            row = qi * block_q + lax.broadcasted_iota(jnp.int32, s.shape, 0)
            col = ki * block_kv + lax.broadcasted_iota(jnp.int32, s.shape, 1)
            s = jnp.where(col > row, MASK_VALUE, s)

        m_prev = m_ref[...]
        m_new = jnp.maximum(m_prev, jnp.max(s, axis=-1, keepdims=True))
        alpha = jnp.exp(m_prev - m_new)
        p = jnp.exp(s - m_new)
        l_ref[...] = alpha * l_ref[...] + jnp.sum(p, axis=-1, keepdims=True)
        acc_ref[...] = alpha * acc_ref[...] + jnp.dot(
            p.astype(v.dtype), v, preferred_element_type=jnp.float32
        )
        m_ref[...] = m_new

    if causal:
        # Skip kv tiles strictly above the diagonal for every row of this q tile
        # (~halves the work for causal attention).
        @pl.when(ki * block_kv <= qi * block_q + (block_q - 1))
        def _():
            _compute()
    else:
        _compute()

    @pl.when(ki == pl.num_programs(2) - 1)
    def _finalize():
        # Deferred normalization on the (block_q, E) accumulator; approximate
        # reciprocal runs on the EUP slot.
        inv_l = pl.reciprocal(l_ref[...], approx=True)
        o_ref[...] = (acc_ref[...] * inv_l).astype(o_ref.dtype)


def attention_pallas(queryable, keyable, wq, wk, wv, *, mask=False,
                     block_q=256, block_kv=256, compute_dtype=None):
    """queryable: (B, Sq, E), keyable: (B, Sk, E); wq/wk/wv in PyTorch layout (out, in)."""
    B, Sq, E = queryable.shape
    Bk, Sk, Ek = keyable.shape
    assert Bk == B and Ek == E
    if mask:
        # PyTorch builds an (Sk, Sk) causal mask and broadcasts it against (Sq, Sk)
        # scores; that only makes sense for Sq == Sk, so we keep the same contract.
        assert Sq == Sk, "causal mask requires Sq == Sk (matches the PyTorch module)"
    if compute_dtype is None:
        compute_dtype = queryable.dtype
    out_dtype = queryable.dtype

    # Wrapper glue (not hot path): transpose weights to [in, out], fold the softmax
    # scale into Wq once, cast MXU inputs to compute_dtype (bf16 fast path on v6e/v7x).
    scale = 1.0 / math.sqrt(E)
    wq_t = (wq.T * scale).astype(compute_dtype)
    wk_t = wk.T.astype(compute_dtype)
    wv_t = wv.T.astype(compute_dtype)
    xq = queryable.astype(compute_dtype)
    xk = keyable.astype(compute_dtype)

    # Projections hoisted out of the attention loop (done once, not per q tile).
    q = _linear(xq, wq_t)   # (B, Sq, E), pre-scaled
    k = _linear(xk, wk_t)   # (B, Sk, E)
    v = _linear(xk, wv_t)   # (B, Sk, E)

    bq = _choose_block(Sq, block_q)
    bkv = _choose_block(Sk, block_kv)
    grid = (B, Sq // bq, Sk // bkv)

    kernel = functools.partial(
        _flash_attn_kernel, causal=mask, block_q=bq, block_kv=bkv
    )

    return pl.pallas_call(
        kernel,
        out_shape=jax.ShapeDtypeStruct((B, Sq, E), out_dtype),
        grid_spec=pltpu.PrefetchScalarGridSpec(
            num_scalar_prefetch=0,
            grid=grid,
            in_specs=[
                pl.BlockSpec((None, bq, E), lambda b, qi, ki: (b, qi, 0)),
                pl.BlockSpec((None, bkv, E), lambda b, qi, ki: (b, ki, 0)),
                pl.BlockSpec((None, bkv, E), lambda b, qi, ki: (b, ki, 0)),
            ],
            out_specs=pl.BlockSpec((None, bq, E), lambda b, qi, ki: (b, qi, 0)),
            scratch_shapes=[
                pltpu.VMEM((bq, 1), jnp.float32),   # running max m
                pltpu.VMEM((bq, 1), jnp.float32),   # running denom l
                pltpu.VMEM((bq, E), jnp.float32),   # unnormalized output accumulator
            ],
        ),
        compiler_params=pltpu.CompilerParams(
            dimension_semantics=("parallel", "parallel", "arbitrary"),
            vmem_limit_bytes=_VMEM_LIMIT,
        ),
    )(q, k, v)


def attention_reference(queryable, keyable, wq, wk, wv, *, mask=False):
    """Pure-JAX reference mirroring the PyTorch module (f32)."""
    E = queryable.shape[-1]
    Q = queryable @ wq.T
    K = keyable @ wk.T
    V = keyable @ wv.T
    scores = jnp.einsum("bqe,bke->bqk", Q, K) / math.sqrt(E)
    if mask:
        Sk = scores.shape[-1]
        causal = jnp.triu(jnp.ones((Sk, Sk), dtype=bool), k=1)
        scores = jnp.where(causal, -jnp.inf, scores)
    A = jax.nn.softmax(scores, axis=-1)
    return jnp.einsum("bqk,bke->bqe", A, V)


if __name__ == "__main__":
    key = jax.random.PRNGKey(0)

    def make_inputs(B, Sq, Sk, E, k):
        k1, k2, k3, k4, k5 = jax.random.split(k, 5)
        queryable = jax.random.normal(k1, (B, Sq, E), jnp.float32)
        keyable = jax.random.normal(k2, (B, Sk, E), jnp.float32)
        bound = 1.0 / math.sqrt(E)  # torch.nn.Linear default init range
        wq = jax.random.uniform(k3, (E, E), jnp.float32, -bound, bound)
        wk = jax.random.uniform(k4, (E, E), jnp.float32, -bound, bound)
        wv = jax.random.uniform(k5, (E, E), jnp.float32, -bound, bound)
        return queryable, keyable, wq, wk, wv

    # (B, Sq, Sk, E, compute dtypes): small demo shape + a multi-tile shape that
    # exercises the flash tiling (2 q blocks x 2 kv blocks) and the bf16 MXU path.
    configs = [
        (2, 8, 8, 32, (jnp.float32,)),
        (2, 512, 512, 128, (jnp.float32, jnp.bfloat16)),
    ]
    # Tolerances are looser than 1e-5 because the kernel uses the approximate EUP
    # reciprocal for normalization, online-softmax reassociation, and (for bf16)
    # bf16 MXU inputs with f32 accumulation.
    tol_by_dtype = {jnp.dtype(jnp.float32): 2e-2, jnp.dtype(jnp.bfloat16): 5e-2}

    for B, Sq, Sk, E, dtypes in configs:
        key, sub = jax.random.split(key)
        q_in, k_in, wq, wk, wv = make_inputs(B, Sq, Sk, E, sub)
        for use_mask in (False, True):
            ref = attention_reference(q_in, k_in, wq, wk, wv, mask=use_mask)
            for cdt in dtypes:
                out = attention_pallas(q_in, k_in, wq, wk, wv,
                                       mask=use_mask, compute_dtype=cdt)
                out = jax.block_until_ready(out)
                assert out.shape == (B, Sq, E)
                tol = tol_by_dtype[jnp.dtype(cdt)]
                out32 = out.astype(jnp.float32)
                max_err = jnp.max(jnp.abs(out32 - ref))
                assert jnp.allclose(out32, ref, atol=tol, rtol=tol), (
                    f"mismatch B={B} Sq={Sq} Sk={Sk} E={E} mask={use_mask} "
                    f"dtype={jnp.dtype(cdt).name}: max err {max_err}"
                )

    print("KERNEL_OK")
</pallas_src>

<mosaic_0001>
module attributes {stable_mosaic.version = 11 : i64} {
  func.func @_proj_kernel(%arg0: i32, %arg1: memref<16x32xf32, #tpu.memory_space<vmem>>, %arg2: memref<32x32xf32, #tpu.memory_space<vmem>>, %arg3: memref<16x32xf32, #tpu.memory_space<vmem>>) attributes {dimension_semantics = [#tpu.dimension_semantics<parallel>], iteration_bounds = array<i64: 1>, scalar_prefetch = 0 : i64, scratch_operands = 0 : i64, tpu.core_type = #tpu.core_type<tc>, window_params = [{transform_indices = @transform_0, window_bounds = array<i64: 16, 32>}, {pipeline_mode = #tpu.pipeline_mode<synchronous>, transform_indices = @transform_1, window_bounds = array<i64: 32, 32>}, {transform_indices = @transform_2, window_bounds = array<i64: 16, 32>}]} {
    %c0 = arith.constant 0 : index
    %c0_0 = arith.constant 0 : index
    %0 = vector.load %arg1[%c0, %c0_0] : memref<16x32xf32, #tpu.memory_space<vmem>>, vector<16x32xf32>
    %c0_1 = arith.constant 0 : index
    %c0_2 = arith.constant 0 : index
    %1 = vector.load %arg2[%c0_1, %c0_2] : memref<32x32xf32, #tpu.memory_space<vmem>>, vector<32x32xf32>
    %cst = arith.constant dense<0.000000e+00> : vector<16x32xf32>
    %2 = tpu.matmul %0, %1, %cst {dimension_numbers = #tpu.dot_dimension_numbers<[1], [0], [0], [1], [0, 0, 1, 1], [], []>} : vector<16x32xf32>, vector<32x32xf32>, vector<16x32xf32> -> vector<16x32xf32>
    %c0_3 = arith.constant 0 : index
    %c0_4 = arith.constant 0 : index
    %3 = vector.load %arg3[%c0_3, %c0_4] : memref<16x32xf32, #tpu.memory_space<vmem>>, vector<16x32xf32>
    tpu.vector_store %arg3[%c0_3, %c0_4], %2 {strides = array<i32>} : memref<16x32xf32, #tpu.memory_space<vmem>>, vector<16x32xf32>,
    return
  }
  func.func @transform_0(%arg0: i32) -> (i32, i32) {
    %c0_i32 = arith.constant 0 : i32
    %c0_i32_0 = arith.constant 0 : i32
    return %arg0, %c0_i32 : i32, i32
  }
  func.func @transform_1(%arg0: i32) -> (i32, i32) {
    %c0_i32 = arith.constant 0 : i32
    %c0_i32_0 = arith.constant 0 : i32
    %c0_i32_1 = arith.constant 0 : i32
    return %c0_i32, %c0_i32_0 : i32, i32
  }
  func.func @transform_2(%arg0: i32) -> (i32, i32) {
    %c0_i32 = arith.constant 0 : i32
    %c0_i32_0 = arith.constant 0 : i32
    return %arg0, %c0_i32 : i32, i32
  }
}

</mosaic_0001>

<llo_original>
// kernel: tpu_custom_call.1
$region0: #{tpu_custom_call.1}
  #allocation0 [shape = 'u32[]', space=smem, size = 0x4, offset = 0x4, fixed_abs, tag = 'smem constant byte address 0x4 - core index']
  #allocation1 [shape = 'u32[144,128]{1,0:T(1,128)}', space=vmem, size = 0x12000, scoped, tag = 'internal scratch']
  %s0 = inlined_call_operand.hbm [shape: f32[16,32], index: 0, kind: input, shape index: {}]
  %s1 = inlined_call_operand.hbm [shape: f32[32,32], index: 1, kind: input, shape index: {}]
  %s2 = inlined_call_operand.hbm [shape: f32[16,32], index: 2, kind: output, shape index: {}]
  %s3 = sld [smem:[#allocation0]]
  $region26: #{tpu_custom_call.1} parent=0
    _
  %s5 = ssub.s32 1, %s3
  %s6 = scalar_select 0, %s5, %s3
  $region1: #{tpu_custom_call.1} parent=0
    #allocation2 [shape = 'u8[8192]{0}', space=vmem, size = 0x2000, scoped, tag = 'input window, operand 0, single buffered']
    #allocation3 [shape = 's32[1]{0}', space=sflag, size = 0x4, scoped, tag = 'scoped memory for tpu_custom_call.1']
    #allocation4 [shape = 's32[1]{0}', space=sflag, size = 0x4, scoped, tag = 'scoped memory for tpu_custom_call.1']
    #allocation5 [shape = 'u8[16384]{0}', space=vmem, size = 0x4000, scoped, tag = 'input window, operand 1, single buffered']
    #allocation6 [shape = 's32[1]{0}', space=sflag, size = 0x4, scoped, tag = 'scoped memory for tpu_custom_call.1']
    #allocation7 [shape = 'u8[8192]{0}', space=vmem, size = 0x2000, scoped, tag = 'output window, operand 0, single buffered']
    %7 = vsyncpa [#allocation3], 0
    %8 = vsyncpa [#allocation6], 0
    %9 = vsyncpa [#allocation4], 0
    // Predicated region
    $region2: #{tpu_custom_call.1} parent=1 // pred_check
      _
    $region3: #{tpu_custom_call.1} parent=1 // pred_check_branch
      %11 = sbr.rel (0) target = $region5
    $region4: #{tpu_custom_call.1} parent=1 // pred_region
      %s13 = ssub.s32 256, 256
      %14 = vsyncadd [#allocation3], %s13
      %s15 = sshll.u32 [#allocation2], 4
      %s16 = int_to_ptr.vmem [resolvable:$true] %s15
      %21 = dma.hbm_to_vmem [thread:$0]  %s0, 256, %s16, [#allocation3], 128, 128, 8
    $region5: #{tpu_custom_call.1} parent=1 // pred_fallthru
      _
    // Predicated region
    $region6: #{tpu_custom_call.1} parent=1 // pred_check
      _
    $region7: #{tpu_custom_call.1} parent=1 // pred_check_branch
      %23 = sbr.rel (0) target = $region9
    $region8: #{tpu_custom_call.1} parent=1 // pred_region
      %s25 = ssub.s32 512, 512
      %26 = vsyncadd [#allocation6], %s25
      %s27 = sshll.u32 [#allocation5], 4
      %s28 = int_to_ptr.vmem [resolvable:$true] %s27
      %33 = dma.hbm_to_vmem [thread:$0]  %s1, 512, %s28, [#allocation6], 128, 128, 8
    $region9: #{tpu_custom_call.1} parent=1 // pred_fallthru
      _
    // Predicated region
    $region10: #{tpu_custom_call.1} parent=1 // pred_check
      _
    $region11: #{tpu_custom_call.1} parent=1 // pred_check_branch
      %35 = sbr.rel (0) target = $region13
    $region12: #{tpu_custom_call.1} parent=1 // pred_region
      %36 = dma.done [#allocation3], 256
    $region13: #{tpu_custom_call.1} parent=1 // pred_fallthru
      _
    // Predicated region
    $region14: #{tpu_custom_call.1} parent=1 // pred_check
      _
    $region15: #{tpu_custom_call.1} parent=1 // pred_check_branch
      %38 = sbr.rel (0) target = $region17
    $region16: #{tpu_custom_call.1} parent=1 // pred_region
      %39 = dma.done [#allocation6], 512
    $region17: #{tpu_custom_call.1} parent=1 // pred_fallthru
      _
    %v40 = vld [vmem:[#allocation2] sm:$0xff]
    %v41 = vld [vmem:[#allocation2 + $0x8] sm:$0xff]
    %v42 = vld [vmem:[#allocation5] sm:$0xff]
    %v43 = vld [vmem:[#allocation5 + $0x8] sm:$0xff]
    %v44 = vld [vmem:[#allocation5 + $0x10] sm:$0xff]
    %v45 = vld [vmem:[#allocation5 + $0x18] sm:$0xff]
    %vm46 = vcmask 261120
    %v48 = vsel %vm46, %v40, 0
    %v51 = vsel %vm46, %v41, 0
    %53 = vmatprep.subr.mxu0 0.0
    %54 = vmatpush1.msra.mxu0 %v42
    %55 = vmatprep.subr.mxu0 0.0
    %56 = vmatpush1.msra.mxu0 %v43
    %57 = vmatprep.subr.mxu0 0.0
    %58 = vmatpush1.msra.mxu0 %v44
    %59 = vmatprep.subr.mxu0 0.0
    %60 = vmatpush1.msra.mxu0 %v45
    %61 = vmatprep.subr.mxu0 0.0
    %62 = vmatpush1.msra.mxu0 0.0
    %63 = vmatprep.subr.mxu0 0.0
    %64 = vmatpush1.msra.mxu0 0.0
    %65 = vmatprep.subr.mxu0 0.0
    %66 = vmatpush1.msra.mxu0 0.0
    %67 = vmatprep.subr.mxu0 0.0
    %68 = vmatpush1.msra.mxu0 0.0
    %69 = vmatprep.subr.mxu0 0.0
    %70 = vmatpush1.msra.mxu0 0.0
    %71 = vmatprep.subr.mxu0 0.0
    %72 = vmatpush1.msra.mxu0 0.0
    %73 = vmatprep.subr.mxu0 0.0
    %74 = vmatpush1.msra.mxu0 0.0
    %75 = vmatprep.subr.mxu0 0.0
    %76 = vmatpush1.msra.mxu0 0.0
    %77 = vmatprep.subr.mxu0 0.0
    %78 = vmatpush1.msra.mxu0 0.0
    %79 = vmatprep.subr.mxu0 0.0
    %80 = vmatpush1.msra.mxu0 0.0
    %81 = vmatprep.subr.mxu0 0.0
    %82 = vmatpush1.msra.mxu0 0.0
    %83 = vmatprep.subr.mxu0 0.0
    %84 = vmatpush1.msra.mxu0 0.0
    %85 = vmatprep.subr.mxu0 0.0
    %86 = vmatpush1.msra.mxu0 0.0
    %87 = vmatprep.subr.mxu0 0.0
    %88 = vmatpush1.msra.mxu0 0.0
    %89 = vmatprep.subr.mxu0 0.0
    %90 = vmatpush1.msra.mxu0 0.0
    %91 = vmatprep.subr.mxu0 0.0
    %92 = vmatpush1.msra.mxu0 0.0
    %93 = vmatprep.subr.mxu0 0.0
    %94 = vmatpush1.msra.mxu0 0.0
    %95 = vmatprep.subr.mxu0 0.0
    %96 = vmatpush1.msra.mxu0 0.0
    %97 = vmatprep.subr.mxu0 0.0
    %98 = vmatpush1.msra.mxu0 0.0
    %99 = vmatprep.subr.mxu0 0.0
    %100 = vmatpush1.msra.mxu0 0.0
    %101 = vmatprep.subr.mxu0 0.0
    %102 = vmatpush1.msra.mxu0 0.0
    %103 = vmatprep.subr.mxu0 0.0
    %104 = vmatpush1.msra.mxu0 0.0
    %105 = vmatprep.subr.mxu0 0.0
    %106 = vmatpush1.msra.mxu0 0.0
    %107 = vmatprep.subr.mxu0 0.0
    %108 = vmatpush1.msra.mxu0 0.0
    %109 = vmatprep.subr.mxu0 0.0
    %110 = vmatpush1.msra.mxu0 0.0
    %111 = vmatprep.subr.mxu0 0.0
    %112 = vmatpush1.msra.mxu0 0.0
    %113 = vmatprep.subr.mxu0 0.0
    %114 = vmatpush1.msra.mxu0 0.0
    %115 = vmatprep.subr.mxu0 0.0
    %116 = vmatpush1.msra.mxu0 0.0
    %117 = vmatprep.mubr.f32.mxu0 0.0
    %118 = vmatmul.mubr.f32.gmra.mrb[0].mxu0 %v48
    %v119 = vpop.f32.mrb[0].mxu0
    %v120 = vadd.f32 0.0, %v119
    %v121 = vpop.f32.mrb[0].mxu0
    %122 = vmatprep.mubr.f32.mxu0 0.0
    %123 = vmatmul.mubr.f32.gmra.mrb[0].mxu0 %v51
    %v124 = vpop.f32.mrb[0].mxu0
    %v125 = vadd.f32 0.0, %v124
    %v126 = vpop.f32.mrb[0].mxu0
    %127 = vdwg.mxu0
    %128 = vst.msk [vmem:[#allocation7] sm:$0xff] %vm46, %v120
    %129 = vst.msk [vmem:[#allocation7 + $0x8] sm:$0xff] %vm46, %v125
    // Predicated region
    $region18: #{tpu_custom_call.1} parent=1 // pred_check
      _
    $region19: #{tpu_custom_call.1} parent=1 // pred_check_branch
      %131 = sbr.rel (0) target = $region21
    $region20: #{tpu_custom_call.1} parent=1 // pred_region
      %s133 = ssub.s32 256, 256
      %134 = vsyncadd [#allocation4], %s133
      %s135 = sshll.u32 [#allocation7], 4
      %s136 = int_to_ptr.vmem [resolvable:$true] %s135
      %141 = dma.vmem_to_hbm [thread:$0]  %s136, 256, %s2, [#allocation4], 128, 128, 8
    $region21: #{tpu_custom_call.1} parent=1 // pred_fallthru
      _
    // Predicated region
    $region22: #{tpu_custom_call.1} parent=1 // pred_check
      _
    $region23: #{tpu_custom_call.1} parent=1 // pred_check_branch
      %143 = sbr.rel (0) target = $region25
    $region24: #{tpu_custom_call.1} parent=1 // pred_region
      %144 = dma.done [#allocation4], 256
    $region25: #{tpu_custom_call.1} parent=1 // pred_fallthru
      _
    %145 = vsyncpa [#allocation3], 1
    %146 = vsyncpa [#allocation6], 1
    %147 = vsyncpa [#allocation4], 1

</llo_original>
